<compile_context>
chip_gen: v5e
topology: v5e:2x2
jax: 0.10.0
libtpu: 0.0.40
codegen_flags: <defaults>
</compile_context>

<pallas_src>
import jax
import jax.numpy as jnp
from jax.experimental import pallas as pl
from jax.experimental.pallas import tpu as pltpu


def _round_up(x, m):
    return (x + m - 1) // m * m


# ------------------------------ Pallas kernel -------------------------------

def _mvit2_attn_kernel(x_ref, wkvi_ref, bkvi_ref, wo_ref, bo_ref, o_ref):
    """One batch tile: x (BT, N, D) -> out (BT, N, D)."""
    bt, n, d = x_ref.shape
    p = wkvi_ref.shape[1]

    # Flatten (BT, N, D) -> (BT*N, D): leading dims merge, last dim unchanged,
    # so the reshape is layout-preserving (free).
    xf = x_ref[...].reshape(bt * n, d).astype(jnp.bfloat16)

    # Fused fc_k | fc_v | fc_i: ONE lane-dense bf16 MXU matmul over every
    # token of every batch element in the tile, f32 accumulation.
    slab = (jnp.dot(xf, wkvi_ref[...], preferred_element_type=jnp.float32)
            + bkvi_ref[...])                                  # (BT*N, P) f32
    slab = slab.reshape(bt, n, p)                             # layout-free

    k = slab[..., 0:d]                                        # (BT, N, D)
    v = slab[..., d:2 * d]                                    # (BT, N, D)
    i = slab[..., 2 * d:2 * d + 1]                            # (BT, N, 1)

    # Per-batch softmax over the token axis (torch dim=1), folded into the
    # context reduction: ctx = (sum_n e_n * k_n) / (sum_n e_n).
    m = jnp.max(i, axis=1, keepdims=True)                     # (BT, 1, 1) XLU
    e = jnp.exp(i - m)                                        # (BT, N, 1) EUP
    denom = jnp.sum(e, axis=1, keepdims=True)                 # (BT, 1, 1) XLU
    ctx = (jnp.sum(e * k, axis=1, keepdims=True)
           * pl.reciprocal(denom, approx=True))               # (BT, 1, D)

    v = (v * ctx).astype(jnp.bfloat16).reshape(bt * n, d)     # (BT*N, D)

    out = (jnp.dot(v, wo_ref[...], preferred_element_type=jnp.float32)
           + bo_ref[...])                                     # (BT*N, D) f32
    # NOTE: output last dim D=32 < 128 lanes -> masked stores on writeback;
    # unavoidable while the host-facing layout matches the PyTorch module.
    o_ref[...] = out.reshape(bt, n, d).astype(o_ref.dtype)


# ------------------------------ host wrappers --------------------------------

def pack_params(p, d_model):
    """One-time parameter transform: pack fc_k/fc_v/fc_i lane-densely (bf16)."""
    D = d_model
    kvi = 2 * D + 1
    P = max(128, _round_up(kvi, 128))

    # torch Linear: y = x @ W.T + b  -> packed column j is torch-weight row j.
    w_kvi = jnp.zeros((D, P), jnp.float32)
    w_kvi = w_kvi.at[:, 0:D].set(p["wk"].T)
    w_kvi = w_kvi.at[:, D:2 * D].set(p["wv"].T)
    w_kvi = w_kvi.at[:, 2 * D:kvi].set(p["wi"].T)

    b_kvi = jnp.zeros((1, P), jnp.float32)
    b_kvi = b_kvi.at[:, 0:D].set(p["bk"][None, :])
    b_kvi = b_kvi.at[:, D:2 * D].set(p["bv"][None, :])
    b_kvi = b_kvi.at[:, 2 * D:kvi].set(p["bi"][None, :])

    return {
        "w_kvi": w_kvi.astype(jnp.bfloat16),     # (D, P)  bf16 MXU operand
        "b_kvi": b_kvi,                          # (1, P)  f32
        "w_o": p["wo"].T.astype(jnp.bfloat16),   # (D, D)  bf16 MXU operand
        "b_o": p["bo"][None, :].astype(jnp.float32),   # (1, D)
    }


def _pick_block_b(B, N, D, P, budget_bytes=4 << 20):
    """Largest batch-tile that divides B and keeps the VMEM footprint small."""
    per_b = N * (D + P + 2 * D) * 4          # x + slab + out, f32, rough
    bb = B
    while bb > 1 and (B % bb != 0 or bb * per_b > budget_bytes):
        bb -= 1
    return bb


def mobilevit_v2_attention(x, packed, *, block_b=None):
    """x: (B, N, D) float32 -> (B, N, D) float32."""
    B, N, D = x.shape
    P = packed["w_kvi"].shape[1]
    if block_b is None:
        block_b = _pick_block_b(B, N, D, P)
    assert B % block_b == 0

    return pl.pallas_call(
        _mvit2_attn_kernel,
        out_shape=jax.ShapeDtypeStruct((B, N, D), jnp.float32),
        grid=(B // block_b,),
        in_specs=[
            pl.BlockSpec((block_b, N, D), lambda b: (b, 0, 0)),   # x tile
            pl.BlockSpec((D, P), lambda b: (0, 0)),               # packed k|v|i W
            pl.BlockSpec((1, P), lambda b: (0, 0)),               # packed k|v|i b
            pl.BlockSpec((D, D), lambda b: (0, 0)),               # fc_o weight
            pl.BlockSpec((1, D), lambda b: (0, 0)),               # fc_o bias
        ],
        out_specs=pl.BlockSpec((block_b, N, D), lambda b: (b, 0, 0)),
        compiler_params=pltpu.CompilerParams(
            dimension_semantics=("parallel",)),                    # v7x: 2 TCs
    )(x, packed["w_kvi"], packed["b_kvi"], packed["w_o"], packed["b_o"])


# ------------------------------ reference & init -----------------------------

def reference_forward(x, p):
    """Pure-JAX float32 reference matching the PyTorch module exactly."""
    i = x @ p["wi"].T + p["bi"]                       # (B, N, 1)
    w = jax.nn.softmax(i, axis=1)
    k = x @ p["wk"].T + p["bk"]
    ctx = jnp.sum(w * k, axis=1, keepdims=True)       # (B, 1, D)
    v = (x @ p["wv"].T + p["bv"]) * ctx
    return v @ p["wo"].T + p["bo"]


def init_params(key, d_model):
    # torch init uses normal(std=0.001) weights / zero biases; we use slightly
    # larger deterministic values so the numerical check is meaningful
    # (forward-pass semantics are independent of parameter values).
    ks = jax.random.split(key, 8)
    std_w, std_b = 0.02, 0.01
    return {
        "wi": std_w * jax.random.normal(ks[0], (1, d_model), jnp.float32),
        "bi": std_b * jax.random.normal(ks[1], (1,), jnp.float32),
        "wk": std_w * jax.random.normal(ks[2], (d_model, d_model), jnp.float32),
        "bk": std_b * jax.random.normal(ks[3], (d_model,), jnp.float32),
        "wv": std_w * jax.random.normal(ks[4], (d_model, d_model), jnp.float32),
        "bv": std_b * jax.random.normal(ks[5], (d_model,), jnp.float32),
        "wo": std_w * jax.random.normal(ks[6], (d_model, d_model), jnp.float32),
        "bo": std_b * jax.random.normal(ks[7], (d_model,), jnp.float32),
    }


# ------------------------------ main ------------------------------------------

if __name__ == "__main__":
    key = jax.random.PRNGKey(0)
    kx, kp = jax.random.split(key)

    # Small shapes consistent with the module: (b_s, nq, d_model)
    B, N, D = 2, 64, 32
    x = jax.random.normal(kx, (B, N, D), jnp.float32)
    params = init_params(kp, d_model=D)
    packed = pack_params(params, d_model=D)

    out = mobilevit_v2_attention(x, packed)
    out = jax.block_until_ready(out)

    assert out.shape == (B, N, D), out.shape
    assert bool(jnp.all(jnp.isfinite(out)))

    ref = reference_forward(x, params)
    max_err = float(jnp.max(jnp.abs(out - ref)))
    tol = 1e-3 + 1e-2 * float(jnp.max(jnp.abs(ref)))   # bf16-matmul tolerance
    assert max_err <= tol, (max_err, tol)

    print("KERNEL_OK")
</pallas_src>

<mosaic_0001>
module attributes {stable_mosaic.version = 11 : i64} {
  func.func @_mvit2_attn_kernel(%arg0: i32, %arg1: memref<2x64x32xf32, #tpu.memory_space<vmem>>, %arg2: memref<32x128xbf16, #tpu.memory_space<vmem>>, %arg3: memref<1x128xf32, #tpu.memory_space<vmem>>, %arg4: memref<32x32xbf16, #tpu.memory_space<vmem>>, %arg5: memref<1x32xf32, #tpu.memory_space<vmem>>, %arg6: memref<2x64x32xf32, #tpu.memory_space<vmem>>) attributes {dimension_semantics = [#tpu.dimension_semantics<parallel>], iteration_bounds = array<i64: 1>, scalar_prefetch = 0 : i64, scratch_operands = 0 : i64, tpu.core_type = #tpu.core_type<tc>, window_params = [{transform_indices = @transform_0, window_bounds = array<i64: 2, 64, 32>}, {pipeline_mode = #tpu.pipeline_mode<synchronous>, transform_indices = @transform_1, window_bounds = array<i64: 32, 128>}, {pipeline_mode = #tpu.pipeline_mode<synchronous>, transform_indices = @transform_2, window_bounds = array<i64: 1, 128>}, {pipeline_mode = #tpu.pipeline_mode<synchronous>, transform_indices = @transform_3, window_bounds = array<i64: 32, 32>}, {pipeline_mode = #tpu.pipeline_mode<synchronous>, transform_indices = @transform_4, window_bounds = array<i64: 1, 32>}, {transform_indices = @transform_5, window_bounds = array<i64: 2, 64, 32>}]} {
    %c0 = arith.constant 0 : index
    %c0_0 = arith.constant 0 : index
    %c0_1 = arith.constant 0 : index
    %0 = vector.load %arg1[%c0, %c0_0, %c0_1] : memref<2x64x32xf32, #tpu.memory_space<vmem>>, vector<2x64x32xf32>
    %1 = vector.shape_cast %0 : vector<2x64x32xf32> to vector<128x32xf32>
    %2 = arith.truncf %1 : vector<128x32xf32> to vector<128x32xbf16>
    %c0_2 = arith.constant 0 : index
    %c0_3 = arith.constant 0 : index
    %3 = vector.load %arg2[%c0_2, %c0_3] : memref<32x128xbf16, #tpu.memory_space<vmem>>, vector<32x128xbf16>
    %cst = arith.constant dense<0.000000e+00> : vector<128x128xf32>
    %4 = tpu.matmul %2, %3, %cst {dimension_numbers = #tpu.dot_dimension_numbers<[1], [0], [0], [1], [0, 0, 1, 1], [], []>} : vector<128x32xbf16>, vector<32x128xbf16>, vector<128x128xf32> -> vector<128x128xf32>
    %c0_4 = arith.constant 0 : index
    %c0_5 = arith.constant 0 : index
    %5 = vector.load %arg3[%c0_4, %c0_5] : memref<1x128xf32, #tpu.memory_space<vmem>>, vector<1x128xf32>
    %6 = vector.broadcast %5 : vector<1x128xf32> to vector<128x128xf32>
    %7 = arith.addf %4, %6 : vector<128x128xf32>
    %8 = vector.shape_cast %7 : vector<128x128xf32> to vector<2x64x128xf32>
    %9 = vector.extract_strided_slice %8 {offsets = [0, 0, 0], sizes = [2, 64, 32], strides = [1, 1, 1]} : vector<2x64x128xf32> to vector<2x64x32xf32>
    %10 = vector.extract_strided_slice %8 {offsets = [0, 0, 32], sizes = [2, 64, 32], strides = [1, 1, 1]} : vector<2x64x128xf32> to vector<2x64x32xf32>
    %11 = vector.extract_strided_slice %8 {offsets = [0, 0, 64], sizes = [2, 64, 1], strides = [1, 1, 1]} : vector<2x64x128xf32> to vector<2x64x1xf32>
    %cst_6 = arith.constant dense<0xFF800000> : vector<2x1xf32>
    %12 = vector.multi_reduction <maximumf>, %11, %cst_6 [1] : vector<2x64x1xf32> to vector<2x1xf32>
    %13 = vector.shape_cast %12 : vector<2x1xf32> to vector<2x1x1xf32>
    %14 = vector.broadcast %13 : vector<2x1x1xf32> to vector<2x64x1xf32>
    %15 = arith.subf %11, %14 : vector<2x64x1xf32>
    %16 = math.exp %15 : vector<2x64x1xf32>
    %cst_7 = arith.constant dense<0.000000e+00> : vector<2x1xf32>
    %17 = vector.multi_reduction <add>, %16, %cst_7 [1] : vector<2x64x1xf32> to vector<2x1xf32>
    %18 = vector.shape_cast %17 : vector<2x1xf32> to vector<2x1x1xf32>
    %19 = vector.broadcast %16 : vector<2x64x1xf32> to vector<2x64x32xf32>
    %20 = arith.mulf %19, %9 : vector<2x64x32xf32>
    %cst_8 = arith.constant dense<0.000000e+00> : vector<2x32xf32>
    %21 = vector.multi_reduction <add>, %20, %cst_8 [1] : vector<2x64x32xf32> to vector<2x32xf32>
    %22 = vector.shape_cast %21 : vector<2x32xf32> to vector<2x1x32xf32>
    %23 = tpu.reciprocal %18 {approx = true} : vector<2x1x1xf32> -> vector<2x1x1xf32>
    %24 = vector.broadcast %23 : vector<2x1x1xf32> to vector<2x1x32xf32>
    %25 = arith.mulf %22, %24 : vector<2x1x32xf32>
    %26 = vector.broadcast %25 : vector<2x1x32xf32> to vector<2x64x32xf32>
    %27 = arith.mulf %10, %26 : vector<2x64x32xf32>
    %28 = arith.truncf %27 : vector<2x64x32xf32> to vector<2x64x32xbf16>
    %29 = vector.shape_cast %28 : vector<2x64x32xbf16> to vector<128x32xbf16>
    %c0_9 = arith.constant 0 : index
    %c0_10 = arith.constant 0 : index
    %30 = vector.load %arg4[%c0_9, %c0_10] : memref<32x32xbf16, #tpu.memory_space<vmem>>, vector<32x32xbf16>
    %cst_11 = arith.constant dense<0.000000e+00> : vector<128x32xf32>
    %31 = tpu.matmul %29, %30, %cst_11 {dimension_numbers = #tpu.dot_dimension_numbers<[1], [0], [0], [1], [0, 0, 1, 1], [], []>} : vector<128x32xbf16>, vector<32x32xbf16>, vector<128x32xf32> -> vector<128x32xf32>
    %c0_12 = arith.constant 0 : index
    %c0_13 = arith.constant 0 : index
    %32 = vector.load %arg5[%c0_12, %c0_13] : memref<1x32xf32, #tpu.memory_space<vmem>>, vector<1x32xf32>
    %33 = vector.broadcast %32 : vector<1x32xf32> to vector<128x32xf32>
    %34 = arith.addf %31, %33 : vector<128x32xf32>
    %35 = vector.shape_cast %34 : vector<128x32xf32> to vector<2x64x32xf32>
    %c0_14 = arith.constant 0 : index
    %c0_15 = arith.constant 0 : index
    %c0_16 = arith.constant 0 : index
    %36 = vector.load %arg6[%c0_14, %c0_15, %c0_16] : memref<2x64x32xf32, #tpu.memory_space<vmem>>, vector<2x64x32xf32>
    tpu.vector_store %arg6[%c0_14, %c0_15, %c0_16], %35 {strides = array<i32>} : memref<2x64x32xf32, #tpu.memory_space<vmem>>, vector<2x64x32xf32>,
    return
  }
  func.func @transform_0(%arg0: i32) -> (i32, i32, i32) {
    %c0_i32 = arith.constant 0 : i32
    %c0_i32_0 = arith.constant 0 : i32
    %c0_i32_1 = arith.constant 0 : i32
    return %arg0, %c0_i32, %c0_i32_0 : i32, i32, i32
  }
  func.func @transform_1(%arg0: i32) -> (i32, i32) {
    %c0_i32 = arith.constant 0 : i32
    %c0_i32_0 = arith.constant 0 : i32
    %c0_i32_1 = arith.constant 0 : i32
    return %c0_i32, %c0_i32_0 : i32, i32
  }
  func.func @transform_2(%arg0: i32) -> (i32, i32) {
    %c0_i32 = arith.constant 0 : i32
    %c0_i32_0 = arith.constant 0 : i32
    %c0_i32_1 = arith.constant 0 : i32
    return %c0_i32, %c0_i32_0 : i32, i32
  }
  func.func @transform_3(%arg0: i32) -> (i32, i32) {
    %c0_i32 = arith.constant 0 : i32
    %c0_i32_0 = arith.constant 0 : i32
    %c0_i32_1 = arith.constant 0 : i32
    return %c0_i32, %c0_i32_0 : i32, i32
  }
  func.func @transform_4(%arg0: i32) -> (i32, i32) {
    %c0_i32 = arith.constant 0 : i32
    %c0_i32_0 = arith.constant 0 : i32
    %c0_i32_1 = arith.constant 0 : i32
    return %c0_i32, %c0_i32_0 : i32, i32
  }
  func.func @transform_5(%arg0: i32) -> (i32, i32, i32) {
    %c0_i32 = arith.constant 0 : i32
    %c0_i32_0 = arith.constant 0 : i32
    %c0_i32_1 = arith.constant 0 : i32
    return %arg0, %c0_i32, %c0_i32_0 : i32, i32, i32
  }
}

</mosaic_0001>

<llo_original>
// kernel: tpu_custom_call.1
$region0: #{tpu_custom_call.1}
  #allocation0 [shape = 'u32[]', space=smem, size = 0x4, offset = 0x4, fixed_abs, tag = 'smem constant byte address 0x4 - core index']
  #allocation1 [shape = 'u32[72,128]{1,0:T(1,128)}', space=vmem, size = 0x9000, scoped, tag = 'internal scratch']
  %s0 = inlined_call_operand.vmem [shape: f32[2,64,32], index: 0, kind: input, shape index: {}]
  %s1 = inlined_call_operand.vmem [shape: bf16[32,128], index: 1, kind: input, shape index: {}]
  %s2 = inlined_call_operand.vmem [shape: f32[1,128], index: 2, kind: input, shape index: {}]
  %s3 = inlined_call_operand.vmem [shape: bf16[32,32], index: 3, kind: input, shape index: {}]
  %s4 = inlined_call_operand.vmem [shape: f32[1,32], index: 4, kind: input, shape index: {}]
  %s5 = inlined_call_operand.vmem [shape: f32[2,64,32], index: 5, kind: output, shape index: {}]
  %s6 = sld [smem:[#allocation0]]
  $region30: #{tpu_custom_call.1} parent=0
    _
  %s8 = ssub.s32 1, %s6
  %s9 = scalar_select 0, %s8, %s6
  // Predicated region
  $region2: #{tpu_custom_call.1} parent=0 // pred_check
    _
  $region3: #{tpu_custom_call.1} parent=0 // pred_check_branch
    %11 = sbr.rel (0) target = $region5
  $region4: #{tpu_custom_call.1} parent=0 // pred_region
    _
  $region5: #{tpu_custom_call.1} parent=0 // pred_fallthru
    _
  // Predicated region
  $region6: #{tpu_custom_call.1} parent=0 // pred_check
    _
  $region7: #{tpu_custom_call.1} parent=0 // pred_check_branch
    %13 = sbr.rel (0) target = $region9
  $region8: #{tpu_custom_call.1} parent=0 // pred_region
    _
  $region9: #{tpu_custom_call.1} parent=0 // pred_fallthru
    _
  // Predicated region
  $region10: #{tpu_custom_call.1} parent=0 // pred_check
    _
  $region11: #{tpu_custom_call.1} parent=0 // pred_check_branch
    %15 = sbr.rel (0) target = $region13
  $region12: #{tpu_custom_call.1} parent=0 // pred_region
    _
  $region13: #{tpu_custom_call.1} parent=0 // pred_fallthru
    _
  // Predicated region
  $region14: #{tpu_custom_call.1} parent=0 // pred_check
    _
  $region15: #{tpu_custom_call.1} parent=0 // pred_check_branch
    %17 = sbr.rel (0) target = $region17
  $region16: #{tpu_custom_call.1} parent=0 // pred_region
    _
  $region17: #{tpu_custom_call.1} parent=0 // pred_fallthru
    _
  // Predicated region
  $region18: #{tpu_custom_call.1} parent=0 // pred_check
    _
  $region19: #{tpu_custom_call.1} parent=0 // pred_check_branch
    %19 = sbr.rel (0) target = $region21
  $region20: #{tpu_custom_call.1} parent=0 // pred_region
    _
  $region21: #{tpu_custom_call.1} parent=0 // pred_fallthru
    _
  %v21 = vld [vmem:[%s0] sm:$0xff]
  %v22 = vld [vmem:[%s0 + $0x8] sm:$0xff]
  %v23 = vld [vmem:[%s0 + $0x10] sm:$0xff]
  %v24 = vld [vmem:[%s0 + $0x18] sm:$0xff]
  %v25 = vld [vmem:[%s0 + $0x20] sm:$0xff]
  %v26 = vld [vmem:[%s0 + $0x28] sm:$0xff]
  %v27 = vld [vmem:[%s0 + $0x30] sm:$0xff]
  %v28 = vld [vmem:[%s0 + $0x38] sm:$0xff]
  %v29 = vld [vmem:[%s0 + $0x40] sm:$0xff]
  %v30 = vld [vmem:[%s0 + $0x48] sm:$0xff]
  %v31 = vld [vmem:[%s0 + $0x50] sm:$0xff]
  %v32 = vld [vmem:[%s0 + $0x58] sm:$0xff]
  %v33 = vld [vmem:[%s0 + $0x60] sm:$0xff]
  %v34 = vld [vmem:[%s0 + $0x68] sm:$0xff]
  %v35 = vld [vmem:[%s0 + $0x70] sm:$0xff]
  %v36 = vld [vmem:[%s0 + $0x78] sm:$0xff]
  %v37 = vpack.c.bf16 %v22, %v21
  %v38 = vpack.c.bf16 %v24, %v23
  %v39 = vpack.c.bf16 %v26, %v25
  %v40 = vpack.c.bf16 %v28, %v27
  %v41 = vpack.c.bf16 %v30, %v29
  %v42 = vpack.c.bf16 %v32, %v31
  %v43 = vpack.c.bf16 %v34, %v33
  %v44 = vpack.c.bf16 %v36, %v35
  %v45 = vld [vmem:[%s1] sm:$0xf]
  %v46 = vld [vmem:[%s1 + $0x4] sm:$0xf]
  %v47 = vld [vmem:[%s1 + $0x8] sm:$0xf]
  %v48 = vld [vmem:[%s1 + $0xc] sm:$0xf]
  %v49 = vld [vmem:[%s2] sm:$0x1]
  %v51 = vperm.slane %v49, 0
  %v57 = vunpack.c.l.b16 %v45
  %v58 = vunpack.c.l.b16 %v46
  %v59 = vunpack.c.l.b16 %v47
  %v60 = vunpack.c.l.b16 %v48
  %v61 = vpack.c.b16 %v58, %v57
  %v62 = vpack.c.b16 %v60, %v59
  %vm65 = vcmask 261120
  %v67 = vsel %vm65, %v37, 0
  %v70 = vsel %vm65, %v38, 0
  %v73 = vsel %vm65, %v39, 0
  %v76 = vsel %vm65, %v40, 0
  %v79 = vsel %vm65, %v41, 0
  %v82 = vsel %vm65, %v42, 0
  %v85 = vsel %vm65, %v43, 0
  %v88 = vsel %vm65, %v44, 0
  %90 = vmatpush.bf16.msra.mxu0 0
  %91 = vmatpush.bf16.msra.mxu0 0
  %92 = vmatpush.bf16.msra.mxu0 0
  %93 = vmatpush.bf16.msra.mxu0 0
  %94 = vmatpush.bf16.msra.mxu0 0
  %95 = vmatpush.bf16.msra.mxu0 0
  %96 = vmatpush.bf16.msra.mxu0 %v62
  %97 = vmatpush.bf16.msra.mxu0 %v61
  %98 = vmatmul.bf16.gmra.mxu0 %v67
  %v99 = vpop.f32.mrf.mxu0
  %v100 = vadd.f32 %v51, %v99
  %v101 = vpop.f32.mrf.mxu0
  %v102 = vadd.f32 %v51, %v101
  %103 = vmatmul.bf16.gmra.mxu0 %v70
  %v104 = vpop.f32.mrf.mxu0
  %v105 = vadd.f32 %v51, %v104
  %v106 = vpop.f32.mrf.mxu0
  %v107 = vadd.f32 %v51, %v106
  %108 = vmatmul.bf16.gmra.mxu0 %v73
  %v109 = vpop.f32.mrf.mxu0
  %v110 = vadd.f32 %v51, %v109
  %v111 = vpop.f32.mrf.mxu0
  %v112 = vadd.f32 %v51, %v111
  %113 = vmatmul.bf16.gmra.mxu0 %v76
  %v114 = vpop.f32.mrf.mxu0
  %v115 = vadd.f32 %v51, %v114
  %v116 = vpop.f32.mrf.mxu0
  %v117 = vadd.f32 %v51, %v116
  %118 = vmatmul.bf16.gmra.mxu0 %v79
  %v119 = vpop.f32.mrf.mxu0
  %v120 = vadd.f32 %v51, %v119
  %v121 = vpop.f32.mrf.mxu0
  %v122 = vadd.f32 %v51, %v121
  %123 = vmatmul.bf16.gmra.mxu0 %v82
  %v124 = vpop.f32.mrf.mxu0
  %v125 = vadd.f32 %v51, %v124
  %v126 = vpop.f32.mrf.mxu0
  %v127 = vadd.f32 %v51, %v126
  %128 = vmatmul.bf16.gmra.mxu0 %v85
  %v129 = vpop.f32.mrf.mxu0
  %v130 = vadd.f32 %v51, %v129
  %v131 = vpop.f32.mrf.mxu0
  %v132 = vadd.f32 %v51, %v131
  %133 = vmatmul.bf16.gmra.mxu0 %v88
  %v134 = vpop.f32.mrf.mxu0
  %v135 = vadd.f32 %v51, %v134
  %v136 = vpop.f32.mrf.mxu0
  %v137 = vadd.f32 %v51, %v136
  %138 = vdwg.mxu0
  %vm139 = vcmask 531968
  %v140 = vsel %vm139, %v100, -inf
  %v141 = vsel %vm139, %v102, -inf
  %v142 = vsel %vm139, %v105, -inf
  %v143 = vmax.f32 %v140, %v142
  %v144 = vsel %vm139, %v107, -inf
  %v145 = vmax.f32 %v141, %v144
  %v146 = vsel %vm139, %v110, -inf
  %v147 = vmax.f32 %v143, %v146
  %v148 = vsel %vm139, %v112, -inf
  %v149 = vmax.f32 %v145, %v148
  %v150 = vsel %vm139, %v115, -inf
  %v151 = vmax.f32 %v147, %v150
  %v152 = vsel %vm139, %v117, -inf
  %v153 = vmax.f32 %v149, %v152
  %v154 = vmax.f32 %v151, %v153
  %v155 = vrot.slane %v154, 4
  %v156 = vmax.f32 %v154, %v155
  %v157 = vrot.slane %v156, 2
  %v158 = vmax.f32 %v156, %v157
  %v159 = vrot.slane %v158, 1
  %v160 = vmax.f32 %v158, %v159
  %v161 = vsel %vm139, %v120, -inf
  %v162 = vsel %vm139, %v122, -inf
  %v163 = vsel %vm139, %v125, -inf
  %v164 = vmax.f32 %v161, %v163
  %v165 = vsel %vm139, %v127, -inf
  %v166 = vmax.f32 %v162, %v165
  %v167 = vsel %vm139, %v130, -inf
  %v168 = vmax.f32 %v164, %v167
  %v169 = vsel %vm139, %v132, -inf
  %v170 = vmax.f32 %v166, %v169
  %v171 = vsel %vm139, %v135, -inf
  %v172 = vmax.f32 %v168, %v171
  %v173 = vsel %vm139, %v137, -inf
  %v174 = vmax.f32 %v170, %v173
  %v175 = vmax.f32 %v172, %v174
  %v176 = vrot.slane %v175, 4
  %v177 = vmax.f32 %v175, %v176
  %v178 = vrot.slane %v177, 2
  %v179 = vmax.f32 %v177, %v178
  %v180 = vrot.slane %v179, 1
  %v181 = vmax.f32 %v179, %v180
  %v182 = vsub.f32 %v100, %v160
  %v183 = vsub.f32 %v102, %v160
  %v184 = vsub.f32 %v105, %v160
  %v185 = vsub.f32 %v107, %v160
  %v186 = vsub.f32 %v110, %v160
  %v187 = vsub.f32 %v112, %v160
  %v188 = vsub.f32 %v115, %v160
  %v189 = vsub.f32 %v117, %v160
  %v190 = vsub.f32 %v120, %v181
  %v191 = vsub.f32 %v122, %v181
  %v192 = vsub.f32 %v125, %v181
  %v193 = vsub.f32 %v127, %v181
  %v194 = vsub.f32 %v130, %v181
  %v195 = vsub.f32 %v132, %v181
  %v196 = vsub.f32 %v135, %v181
  %v197 = vsub.f32 %v137, %v181
  %v198 = vmul.f32 %v182, 1.442695
  %v199 = vpow.pop %v198
  %v200 = vmul.f32 %v183, 1.442695
  %v201 = vpow.pop %v200
  %v202 = vmul.f32 %v184, 1.442695
  %v203 = vpow.pop %v202
  %v204 = vmul.f32 %v185, 1.442695
  %v205 = vpow.pop %v204
  %v206 = vmul.f32 %v186, 1.442695
  %v207 = vpow.pop %v206
  %v208 = vmul.f32 %v187, 1.442695
  %v209 = vpow.pop %v208
  %v210 = vmul.f32 %v188, 1.442695
  %v211 = vpow.pop %v210
  %v212 = vmul.f32 %v189, 1.442695
  %v213 = vpow.pop %v212
  %v214 = vmul.f32 %v190, 1.442695
  %v215 = vpow.pop %v214
  %v216 = vmul.f32 %v191, 1.442695
  %v217 = vpow.pop %v216
  %v218 = vmul.f32 %v192, 1.442695
  %v219 = vpow.pop %v218
  %v220 = vmul.f32 %v193, 1.442695
  %v221 = vpow.pop %v220
  %v222 = vmul.f32 %v194, 1.442695
  %v223 = vpow.pop %v222
  %v224 = vmul.f32 %v195, 1.442695
  %v225 = vpow.pop %v224
  %v226 = vmul.f32 %v196, 1.442695
  %v227 = vpow.pop %v226
  %v228 = vmul.f32 %v197, 1.442695
  %v229 = vpow.pop %v228
  %v230 = vsel %vm139, %v199, 0.0
  %v231 = vsel %vm139, %v201, 0.0
  %v232 = vadd.f32 %v230, %v231
  %v233 = vsel %vm139, %v203, 0.0
  %v234 = vadd.f32 %v232, %v233
  %v235 = vsel %vm139, %v205, 0.0
  %v236 = vadd.f32 %v234, %v235
  %v237 = vsel %vm139, %v207, 0.0
  %v238 = vadd.f32 %v236, %v237
  %v239 = vsel %vm139, %v209, 0.0
  %v240 = vadd.f32 %v238, %v239
  %v241 = vsel %vm139, %v211, 0.0
  %v242 = vadd.f32 %v240, %v241
  %v243 = vsel %vm139, %v213, 0.0
  %v244 = vadd.f32 %v242, %v243
  %v245 = vrot.slane %v244, 4
  %v246 = vadd.f32 %v244, %v245
  %v247 = vrot.slane %v246, 2
  %v248 = vadd.f32 %v246, %v247
  %v249 = vrot.slane %v248, 1
  %v250 = vadd.f32 %v248, %v249
  %v251 = vsel %vm139, %v215, 0.0
  %v252 = vsel %vm139, %v217, 0.0
  %v253 = vadd.f32 %v251, %v252
  %v254 = vsel %vm139, %v219, 0.0
  %v255 = vadd.f32 %v253, %v254
  %v256 = vsel %vm139, %v221, 0.0
  %v257 = vadd.f32 %v255, %v256
  %v258 = vsel %vm139, %v223, 0.0
  %v259 = vadd.f32 %v257, %v258
  %v260 = vsel %vm139, %v225, 0.0
  %v261 = vadd.f32 %v259, %v260
  %v262 = vsel %vm139, %v227, 0.0
  %v263 = vadd.f32 %v261, %v262
  %v264 = vsel %vm139, %v229, 0.0
  %v265 = vadd.f32 %v263, %v264
  %v266 = vrot.slane %v265, 4
  %v267 = vadd.f32 %v265, %v266
  %v268 = vrot.slane %v267, 2
  %v269 = vadd.f32 %v267, %v268
  %v270 = vrot.slane %v269, 1
  %v271 = vadd.f32 %v269, %v270
  %273 = vset.pattern.permute.xlu0 64
  %274 = vperm.xlu0 %273, %v199
  %v275 = vpop.permute.xlu0 %274
  %278 = vset.pattern.permute.xlu0 64
  %279 = vperm.xlu0 %278, %v201
  %v280 = vpop.permute.xlu0 %279
  %283 = vset.pattern.permute.xlu0 64
  %284 = vperm.xlu0 %283, %v203
  %v285 = vpop.permute.xlu0 %284
  %288 = vset.pattern.permute.xlu0 64
  %289 = vperm.xlu0 %288, %v205
  %v290 = vpop.permute.xlu0 %289
  %293 = vset.pattern.permute.xlu0 64
  %294 = vperm.xlu0 %293, %v207
  %v295 = vpop.permute.xlu0 %294
  %298 = vset.pattern.permute.xlu0 64
  %299 = vperm.xlu0 %298, %v209
  %v300 = vpop.permute.xlu0 %299
  %303 = vset.pattern.permute.xlu0 64
  %304 = vperm.xlu0 %303, %v211
  %v305 = vpop.permute.xlu0 %304
  %308 = vset.pattern.permute.xlu0 64
  %309 = vperm.xlu0 %308, %v213
  %v310 = vpop.permute.xlu0 %309
  %313 = vset.pattern.permute.xlu0 64
  %314 = vperm.xlu0 %313, %v215
  %v315 = vpop.permute.xlu0 %314
  %318 = vset.pattern.permute.xlu0 64
  %319 = vperm.xlu0 %318, %v217
  %v320 = vpop.permute.xlu0 %319
  %323 = vset.pattern.permute.xlu0 64
  %324 = vperm.xlu0 %323, %v219
  %v325 = vpop.permute.xlu0 %324
  %328 = vset.pattern.permute.xlu0 64
  %329 = vperm.xlu0 %328, %v221
  %v330 = vpop.permute.xlu0 %329
  %333 = vset.pattern.permute.xlu0 64
  %334 = vperm.xlu0 %333, %v223
  %v335 = vpop.permute.xlu0 %334
  %338 = vset.pattern.permute.xlu0 64
  %339 = vperm.xlu0 %338, %v225
  %v340 = vpop.permute.xlu0 %339
  %343 = vset.pattern.permute.xlu0 64
  %344 = vperm.xlu0 %343, %v227
  %v345 = vpop.permute.xlu0 %344
  %348 = vset.pattern.permute.xlu0 64
  %349 = vperm.xlu0 %348, %v229
  %v350 = vpop.permute.xlu0 %349
  %v352 = vmul.f32 %v275, %v100
  %v353 = vmul.f32 %v280, %v102
  %v354 = vmul.f32 %v285, %v105
  %v355 = vmul.f32 %v290, %v107
  %v356 = vmul.f32 %v295, %v110
  %v357 = vmul.f32 %v300, %v112
  %v358 = vmul.f32 %v305, %v115
  %v359 = vmul.f32 %v310, %v117
  %v360 = vmul.f32 %v315, %v120
  %v361 = vmul.f32 %v320, %v122
  %v362 = vmul.f32 %v325, %v125
  %v363 = vmul.f32 %v330, %v127
  %v364 = vmul.f32 %v335, %v130
  %v365 = vmul.f32 %v340, %v132
  %v366 = vmul.f32 %v345, %v135
  %v367 = vmul.f32 %v350, %v137
  %v368 = vsel %vm65, %v352, 0.0
  %v369 = vsel %vm65, %v353, 0.0
  %v370 = vadd.f32 %v368, %v369
  %v371 = vsel %vm65, %v354, 0.0
  %v372 = vadd.f32 %v370, %v371
  %v373 = vsel %vm65, %v355, 0.0
  %v374 = vadd.f32 %v372, %v373
  %v375 = vsel %vm65, %v356, 0.0
  %v376 = vadd.f32 %v374, %v375
  %v377 = vsel %vm65, %v357, 0.0
  %v378 = vadd.f32 %v376, %v377
  %v379 = vsel %vm65, %v358, 0.0
  %v380 = vadd.f32 %v378, %v379
  %v381 = vsel %vm65, %v359, 0.0
  %v382 = vadd.f32 %v380, %v381
  %v383 = vrot.slane %v382, 4
  %v384 = vadd.f32 %v382, %v383
  %v385 = vrot.slane %v384, 2
  %v386 = vadd.f32 %v384, %v385
  %v387 = vrot.slane %v386, 1
  %v388 = vadd.f32 %v386, %v387
  %v389 = vsel %vm65, %v360, 0.0
  %v390 = vsel %vm65, %v361, 0.0
  %v391 = vadd.f32 %v389, %v390
  %v392 = vsel %vm65, %v362, 0.0
  %v393 = vadd.f32 %v391, %v392
  %v394 = vsel %vm65, %v363, 0.0
  %v395 = vadd.f32 %v393, %v394
  %v396 = vsel %vm65, %v364, 0.0
  %v397 = vadd.f32 %v395, %v396
  %v398 = vsel %vm65, %v365, 0.0
  %v399 = vadd.f32 %v397, %v398
  %v400 = vsel %vm65, %v366, 0.0
  %v401 = vadd.f32 %v399, %v400
  %v402 = vsel %vm65, %v367, 0.0
  %v403 = vadd.f32 %v401, %v402
  %v404 = vrot.slane %v403, 4
  %v405 = vadd.f32 %v403, %v404
  %v406 = vrot.slane %v405, 2
  %v407 = vadd.f32 %v405, %v406
  %v408 = vrot.slane %v407, 1
  %v409 = vadd.f32 %v407, %v408
  %v410 = vrcp.pop %v250
  %v411 = vrcp.pop %v271
  %413 = vset.pattern.permute.xlu0 64
  %414 = vperm.xlu0 %413, %v410
  %v415 = vpop.permute.xlu0 %414
  %418 = vset.pattern.permute.xlu0 64
  %419 = vperm.xlu0 %418, %v411
  %v420 = vpop.permute.xlu0 %419
  %v422 = vmul.f32 %v388, %v415
  %v423 = vmul.f32 %v409, %v420
  %426 = vrot.lane.b32.xlu0 %v422, 32
  %v427 = vpop.permute.xlu0 %426
  %428 = vrot.lane.b32.xlu0 %v423, 32
  %v429 = vpop.permute.xlu0 %428
  %v432 = vmul.f32 %v100, %v427
  %v433 = vmul.f32 %v102, %v427
  %v434 = vmul.f32 %v105, %v427
  %v435 = vmul.f32 %v107, %v427
  %v436 = vmul.f32 %v110, %v427
  %v437 = vmul.f32 %v112, %v427
  %v438 = vmul.f32 %v115, %v427
  %v439 = vmul.f32 %v117, %v427
  %v440 = vmul.f32 %v120, %v429
  %v441 = vmul.f32 %v122, %v429
  %v442 = vmul.f32 %v125, %v429
  %v443 = vmul.f32 %v127, %v429
  %v444 = vmul.f32 %v130, %v429
  %v445 = vmul.f32 %v132, %v429
  %v446 = vmul.f32 %v135, %v429
  %v447 = vmul.f32 %v137, %v429
  %v448 = vpack.c.bf16 %v432, %v432
  %v449 = vpack.c.bf16 %v433, %v433
  %v450 = vpack.c.bf16 %v434, %v434
  %v451 = vpack.c.bf16 %v435, %v435
  %v452 = vpack.c.bf16 %v436, %v436
  %v453 = vpack.c.bf16 %v437, %v437
  %v454 = vpack.c.bf16 %v438, %v438
  %v455 = vpack.c.bf16 %v439, %v439
  %v456 = vpack.c.bf16 %v440, %v440
  %v457 = vpack.c.bf16 %v441, %v441
  %v458 = vpack.c.bf16 %v442, %v442
  %v459 = vpack.c.bf16 %v443, %v443
  %v460 = vpack.c.bf16 %v444, %v444
  %v461 = vpack.c.bf16 %v445, %v445
  %v462 = vpack.c.bf16 %v446, %v446
  %v463 = vpack.c.bf16 %v447, %v447
  %v464 = vld [vmem:[%s3] sm:$0xf]
  %v465 = vld [vmem:[%s3 + $0x4] sm:$0xf]
  %v466 = vld [vmem:[%s3 + $0x8] sm:$0xf]
  %v467 = vld [vmem:[%s3 + $0xc] sm:$0xf]
  %v468 = vld [vmem:[%s4] sm:$0x1]
  %v470 = vperm.slane %v468, 0
  %v488 = vunpack.c.l.b16 %v448
  %v489 = vunpack.c.l.b16 %v449
  %v490 = vunpack.c.l.b16 %v450
  %v491 = vunpack.c.l.b16 %v451
  %v492 = vunpack.c.l.b16 %v452
  %v493 = vunpack.c.l.b16 %v453
  %v494 = vunpack.c.l.b16 %v454
  %v495 = vunpack.c.l.b16 %v455
  %v496 = vunpack.c.l.b16 %v456
  %v497 = vunpack.c.l.b16 %v457
  %v498 = vunpack.c.l.b16 %v458
  %v499 = vunpack.c.l.b16 %v459
  %v500 = vunpack.c.l.b16 %v460
  %v501 = vunpack.c.l.b16 %v461
  %v502 = vunpack.c.l.b16 %v462
  %v503 = vunpack.c.l.b16 %v463
  %v504 = vpack.c.b16 %v489, %v488
  %v505 = vpack.c.b16 %v491, %v490
  %v506 = vpack.c.b16 %v493, %v492
  %v507 = vpack.c.b16 %v495, %v494
  %v508 = vpack.c.b16 %v497, %v496
  %v509 = vpack.c.b16 %v499, %v498
  %v510 = vpack.c.b16 %v501, %v500
  %v511 = vpack.c.b16 %v503, %v502
  %512 = vrot.lane.b32.xlu0 %v504, 96
  %v513 = vpop.permute.xlu0 %512
  %514 = vrot.lane.b32.xlu0 %v505, 96
  %v515 = vpop.permute.xlu0 %514
  %516 = vrot.lane.b32.xlu0 %v506, 96
  %v517 = vpop.permute.xlu0 %516
  %518 = vrot.lane.b32.xlu0 %v507, 96
  %v519 = vpop.permute.xlu0 %518
  %520 = vrot.lane.b32.xlu0 %v508, 96
  %v521 = vpop.permute.xlu0 %520
  %522 = vrot.lane.b32.xlu0 %v509, 96
  %v523 = vpop.permute.xlu0 %522
  %524 = vrot.lane.b32.xlu0 %v510, 96
  %v525 = vpop.permute.xlu0 %524
  %526 = vrot.lane.b32.xlu0 %v511, 96
  %v527 = vpop.permute.xlu0 %526
  %v532 = vunpack.c.l.b16 %v464
  %v533 = vunpack.c.l.b16 %v465
  %v534 = vunpack.c.l.b16 %v466
  %v535 = vunpack.c.l.b16 %v467
  %v536 = vpack.c.b16 %v533, %v532
  %v537 = vpack.c.b16 %v535, %v534
  %v541 = vsel %vm65, %v513, 0
  %v544 = vsel %vm65, %v515, 0
  %v547 = vsel %vm65, %v517, 0
  %v550 = vsel %vm65, %v519, 0
  %v553 = vsel %vm65, %v521, 0
  %v556 = vsel %vm65, %v523, 0
  %v559 = vsel %vm65, %v525, 0
  %v562 = vsel %vm65, %v527, 0
  %564 = vmatpush.bf16.msra.mxu0 0
  %565 = vmatpush.bf16.msra.mxu0 0
  %566 = vmatpush.bf16.msra.mxu0 0
  %567 = vmatpush.bf16.msra.mxu0 0
  %568 = vmatpush.bf16.msra.mxu0 0
  %569 = vmatpush.bf16.msra.mxu0 0
  %570 = vmatpush.bf16.msra.mxu0 %v537
  %571 = vmatpush.bf16.msra.mxu0 %v536
  %572 = vmatmul.bf16.gmra.mxu0 %v541
  %v573 = vpop.f32.mrf.mxu0
  %v574 = vadd.f32 %v470, %v573
  %v575 = vpop.f32.mrf.mxu0
  %v576 = vadd.f32 %v470, %v575
  %577 = vmatmul.bf16.gmra.mxu0 %v544
  %v578 = vpop.f32.mrf.mxu0
  %v579 = vadd.f32 %v470, %v578
  %v580 = vpop.f32.mrf.mxu0
  %v581 = vadd.f32 %v470, %v580
  %582 = vmatmul.bf16.gmra.mxu0 %v547
  %v583 = vpop.f32.mrf.mxu0
  %v584 = vadd.f32 %v470, %v583
  %v585 = vpop.f32.mrf.mxu0
  %v586 = vadd.f32 %v470, %v585
  %587 = vmatmul.bf16.gmra.mxu0 %v550
  %v588 = vpop.f32.mrf.mxu0
  %v589 = vadd.f32 %v470, %v588
  %v590 = vpop.f32.mrf.mxu0
  %v591 = vadd.f32 %v470, %v590
  %592 = vmatmul.bf16.gmra.mxu0 %v553
  %v593 = vpop.f32.mrf.mxu0
  %v594 = vadd.f32 %v470, %v593
  %v595 = vpop.f32.mrf.mxu0
  %v596 = vadd.f32 %v470, %v595
  %597 = vmatmul.bf16.gmra.mxu0 %v556
  %v598 = vpop.f32.mrf.mxu0
  %v599 = vadd.f32 %v470, %v598
  %v600 = vpop.f32.mrf.mxu0
  %v601 = vadd.f32 %v470, %v600
  %602 = vmatmul.bf16.gmra.mxu0 %v559
  %v603 = vpop.f32.mrf.mxu0
  %v604 = vadd.f32 %v470, %v603
  %v605 = vpop.f32.mrf.mxu0
  %v606 = vadd.f32 %v470, %v605
  %607 = vmatmul.bf16.gmra.mxu0 %v562
  %v608 = vpop.f32.mrf.mxu0
  %v609 = vadd.f32 %v470, %v608
  %v610 = vpop.f32.mrf.mxu0
  %v611 = vadd.f32 %v470, %v610
  %612 = vdwg.mxu0
  %613 = vst.msk [vmem:[%s5] sm:$0xff] %vm65, %v574
  %614 = vst.msk [vmem:[%s5 + $0x8] sm:$0xff] %vm65, %v576
  %615 = vst.msk [vmem:[%s5 + $0x10] sm:$0xff] %vm65, %v579
  %616 = vst.msk [vmem:[%s5 + $0x18] sm:$0xff] %vm65, %v581
  %617 = vst.msk [vmem:[%s5 + $0x20] sm:$0xff] %vm65, %v584
  %618 = vst.msk [vmem:[%s5 + $0x28] sm:$0xff] %vm65, %v586
  %619 = vst.msk [vmem:[%s5 + $0x30] sm:$0xff] %vm65, %v589
  %620 = vst.msk [vmem:[%s5 + $0x38] sm:$0xff] %vm65, %v591
  %621 = vst.msk [vmem:[%s5 + $0x40] sm:$0xff] %vm65, %v594
  %622 = vst.msk [vmem:[%s5 + $0x48] sm:$0xff] %vm65, %v596
  %623 = vst.msk [vmem:[%s5 + $0x50] sm:$0xff] %vm65, %v599
  %624 = vst.msk [vmem:[%s5 + $0x58] sm:$0xff] %vm65, %v601
  %625 = vst.msk [vmem:[%s5 + $0x60] sm:$0xff] %vm65, %v604
  %626 = vst.msk [vmem:[%s5 + $0x68] sm:$0xff] %vm65, %v606
  %627 = vst.msk [vmem:[%s5 + $0x70] sm:$0xff] %vm65, %v609
  %628 = vst.msk [vmem:[%s5 + $0x78] sm:$0xff] %vm65, %v611
  // Predicated region
  $region22: #{tpu_custom_call.1} parent=0 // pred_check
    _
  $region23: #{tpu_custom_call.1} parent=0 // pred_check_branch
    %630 = sbr.rel (0) target = $region25
  $region24: #{tpu_custom_call.1} parent=0 // pred_region
    _
  $region25: #{tpu_custom_call.1} parent=0 // pred_fallthru
    _
  // Predicated region
  $region26: #{tpu_custom_call.1} parent=0 // pred_check
    _
  $region27: #{tpu_custom_call.1} parent=0 // pred_check_branch
    %632 = sbr.rel (0) target = $region29
  $region28: #{tpu_custom_call.1} parent=0 // pred_region
    _
  $region29: #{tpu_custom_call.1} parent=0 // pred_fallthru
    _

</llo_original>
